<compile_context>
chip_gen: v7x
topology: tpu7x:2x2x1
jax: 0.10.0
libtpu: 0.0.40
codegen_flags: <defaults>
</compile_context>

<pallas_src>
import functools

import jax
import jax.numpy as jnp
from jax.experimental import pallas as pl
from jax.experimental.pallas import tpu as pltpu


def _round_up(x, m):
    return (x + m - 1) // m * m


def _se3dec_kernel(x_ref, w1_ref, b1_ref, w2_ref, b2_ref, w3_ref, b3_ref,
                   out_ref, *, kpad, compute_dtype):
    """FC stack + axis-angle (Rodrigues) -> 3x4 matrices, all in VMEM.

    Last-layer output / out_ref use a lane-dense, component-major layout:
    12 contiguous blocks of `kpad` lanes each, in row-major 3x4 order
    [r00 r01 r02 tx  r10 r11 r12 ty  r20 r21 r22 tz]. kpad is a multiple of
    128, so every slice below is lane-aligned and every store is unmasked.
    """
    x = x_ref[...]

    h1 = jnp.maximum(
        jnp.dot(x, w1_ref[...], preferred_element_type=jnp.float32)
        + b1_ref[...], 0.0)
    h2 = jnp.maximum(
        jnp.dot(h1.astype(compute_dtype), w2_ref[...],
                preferred_element_type=jnp.float32) + b2_ref[...], 0.0)
    t = (jnp.dot(h2.astype(compute_dtype), w3_ref[...],
                 preferred_element_type=jnp.float32) + b3_ref[...])

    K = kpad
    tx = t[:, 0 * K:1 * K]
    ty = t[:, 1 * K:2 * K]
    tz = t[:, 2 * K:3 * K]
    wx = t[:, 3 * K:4 * K]
    wy = t[:, 4 * K:5 * K]
    wz = t[:, 5 * K:6 * K]

    # Rodrigues: R = I + A*S + B*S^2, A = sin(th)/th, B = (1-cos th)/th^2
    theta2 = wx * wx + wy * wy + wz * wz
    small = theta2 < 1e-6            # f32-safe Taylor cutoff
    safe_t2 = jnp.where(small, 1.0, theta2)
    theta = jnp.sqrt(safe_t2)
    A = jnp.where(small, 1.0 - theta2 / 6.0, jnp.sin(theta) / theta)
    B = jnp.where(small, 0.5 - theta2 / 24.0, (1.0 - jnp.cos(theta)) / safe_t2)

    Awx, Awy, Awz = A * wx, A * wy, A * wz
    Bxy, Bxz, Byz = B * wx * wy, B * wx * wz, B * wy * wz

    # Direct lane-aligned stores (no concatenate, no masked partial stores).
    out_ref[:, 0 * K:1 * K] = 1.0 - B * (wy * wy + wz * wz)    # r00
    out_ref[:, 1 * K:2 * K] = Bxy - Awz                        # r01
    out_ref[:, 2 * K:3 * K] = Bxz + Awy                        # r02
    out_ref[:, 3 * K:4 * K] = tx
    out_ref[:, 4 * K:5 * K] = Bxy + Awz                        # r10
    out_ref[:, 5 * K:6 * K] = 1.0 - B * (wx * wx + wz * wz)    # r11
    out_ref[:, 6 * K:7 * K] = Byz - Awx                        # r12
    out_ref[:, 7 * K:8 * K] = ty
    out_ref[:, 8 * K:9 * K] = Bxz - Awy                        # r20
    out_ref[:, 9 * K:10 * K] = Byz + Awx                       # r21
    out_ref[:, 10 * K:11 * K] = 1.0 - B * (wx * wx + wy * wy)  # r22
    out_ref[:, 11 * K:12 * K] = tz


def _pick_batch_tile(bsz, f, h1, h2, kpad, budget_bytes):
    """Largest batch tile (multiple of 8 sublanes) whose double-buffered
    working set fits the VMEM budget (sized for v7x's 64 MiB VMEM)."""
    w_bytes = 2 * 4 * (f * h1 + h1 + h1 * h2 + h2 + h2 * 6 * kpad + 6 * kpad)
    bmax = _round_up(max(bsz, 1), 8)
    for tb in (512, 256, 128, 64, 32, 16, 8):
        if tb > bmax:
            continue
        io_bytes = 2 * 4 * tb * (f + 12 * kpad)
        if w_bytes + io_bytes <= budget_bytes:
            return tb, w_bytes + io_bytes
    return 8, w_bytes + 2 * 4 * 8 * (f + 12 * kpad)


def se3_dec_forward(emb_ta, params, num_se3, se3_dim, *, use_bf16_matmul=False):
    """Pallas implementation of SE3Dec.forward (se3_type='se3aa')."""
    assert se3_dim == 6
    w1, b1, w2, b2, w3, b3 = params
    Bsz = emb_ta.shape[0]
    x = emb_ta.reshape(Bsz, -1).astype(jnp.float32)  # torch.flatten(start_dim=1)
    F = x.shape[1]
    K = num_se3
    H1 = w1.shape[1]
    H2 = w2.shape[1]

    # Permute & zero-pad last-layer columns: interleaved [K x 6] ->
    # component-major [6 x Kpad] so kernel slices/stores are 128-lane aligned.
    kpad = _round_up(K, 128)
    w3p = w3.reshape(H2, K, se3_dim).transpose(0, 2, 1)            # (H2, 6, K)
    w3p = jnp.pad(w3p, ((0, 0), (0, 0), (0, kpad - K)))
    w3p = w3p.reshape(H2, 6 * kpad)
    b3p = b3.reshape(K, se3_dim).transpose(1, 0)                   # (6, K)
    b3p = jnp.pad(b3p, ((0, 0), (0, kpad - K))).reshape(1, 6 * kpad)

    # Batch tiling: pad rows to a multiple of the tile (>= 8 sublanes) so every
    # grid block is full; Pallas double-buffers the x/out tiles across steps.
    budget = 24 * 1024 * 1024
    TB, est_bytes = _pick_batch_tile(Bsz, F, H1, H2, kpad, budget)
    Bpad = _round_up(max(Bsz, 1), TB)
    xp = jnp.pad(x, ((0, Bpad - Bsz), (0, 0)))

    compute_dtype = jnp.bfloat16 if use_bf16_matmul else jnp.float32
    xc = xp.astype(compute_dtype)
    w1c = w1.astype(compute_dtype)
    w2c = w2.astype(compute_dtype)
    w3c = w3p.astype(compute_dtype)
    b1r = b1.reshape(1, -1).astype(jnp.float32)
    b2r = b2.reshape(1, -1).astype(jnp.float32)

    grid = (Bpad // TB,)
    flops = 2 * Bpad * (F * H1 + H1 * H2 + H2 * 6 * kpad)
    bytes_accessed = (xc.size * xc.dtype.itemsize
                      + w1c.size * w1c.dtype.itemsize + 4 * H1
                      + w2c.size * w2c.dtype.itemsize + 4 * H2
                      + w3c.size * w3c.dtype.itemsize + 4 * 6 * kpad
                      + 4 * Bpad * 12 * kpad)
    cost = pl.CostEstimate(flops=flops, transcendentals=3 * Bpad * kpad,
                           bytes_accessed=bytes_accessed)
    vmem_limit = int(min(max(2 * est_bytes, 16 * 1024 * 1024),
                         48 * 1024 * 1024))

    out_flat = pl.pallas_call(
        functools.partial(_se3dec_kernel, kpad=kpad,
                          compute_dtype=compute_dtype),
        out_shape=jax.ShapeDtypeStruct((Bpad, 12 * kpad), jnp.float32),
        grid=grid,
        in_specs=[
            pl.BlockSpec((TB, F), lambda i: (i, 0)),        # x: tiled on batch
            pl.BlockSpec((F, H1), lambda i: (0, 0)),        # weights: resident
            pl.BlockSpec((1, H1), lambda i: (0, 0)),
            pl.BlockSpec((H1, H2), lambda i: (0, 0)),
            pl.BlockSpec((1, H2), lambda i: (0, 0)),
            pl.BlockSpec((H2, 6 * kpad), lambda i: (0, 0)),
            pl.BlockSpec((1, 6 * kpad), lambda i: (0, 0)),
        ],
        out_specs=pl.BlockSpec((TB, 12 * kpad), lambda i: (i, 0)),
        compiler_params=pltpu.CompilerParams(
            dimension_semantics=("parallel",),   # batch axis -> both TCs on v7x
            vmem_limit_bytes=vmem_limit),
        cost_estimate=cost,
    )(xc, w1c, b1r, w2c, b2r, w3c, b3p)

    # (Bpad, 12*Kpad) component-major -> (B, K, 3, 4)
    out = out_flat[:Bsz].reshape(Bsz, 12, kpad)[:, :, :K]
    return out.transpose(0, 2, 1).reshape(Bsz, K, 3, 4)


def se3_dec_reference(emb_ta, params, num_se3, se3_dim):
    """Pure-JAX reference mirroring the PyTorch module (se3_type='se3aa')."""
    w1, b1, w2, b2, w3, b3 = params
    x = emb_ta.reshape(emb_ta.shape[0], -1).astype(jnp.float32)
    h1 = jnp.maximum(x @ w1 + b1, 0.0)
    h2 = jnp.maximum(h1 @ w2 + b2, 0.0)
    t = (h2 @ w3 + b3).reshape(-1, num_se3, se3_dim)
    trans = t[..., :3]
    w = t[..., 3:]
    wx, wy, wz = w[..., 0], w[..., 1], w[..., 2]
    zeros = jnp.zeros_like(wx)
    S = jnp.stack([
        jnp.stack([zeros, -wz, wy], axis=-1),
        jnp.stack([wz, zeros, -wx], axis=-1),
        jnp.stack([-wy, wx, zeros], axis=-1)], axis=-2)
    theta2 = (wx * wx + wy * wy + wz * wz)[..., None, None]
    small = theta2 < 1e-6
    safe_t2 = jnp.where(small, 1.0, theta2)
    theta = jnp.sqrt(safe_t2)
    A = jnp.where(small, 1.0 - theta2 / 6.0, jnp.sin(theta) / theta)
    B = jnp.where(small, 0.5 - theta2 / 24.0, (1.0 - jnp.cos(theta)) / safe_t2)
    R = jnp.eye(3, dtype=jnp.float32) + A * S + B * (S @ S)
    return jnp.concatenate([R, trans[..., None]], axis=-1)


def init_params(key, in_features, num_se3, se3_dim):
    """Deterministic synthetic init (mimics init_se3layer_identity for se3aa)."""
    k1, k2, k3, _ = jax.random.split(key, 4)
    w1 = (jax.random.normal(k1, (in_features, 256), jnp.float32)
          / jnp.sqrt(jnp.float32(in_features)))
    b1 = jnp.zeros((256,), jnp.float32)
    w2 = jax.random.normal(k2, (256, 128), jnp.float32) / jnp.sqrt(256.0)
    b2 = jnp.zeros((128,), jnp.float32)
    # last layer: tiny uniform weights, zero bias -> ~identity transforms (se3aa)
    w3 = jax.random.uniform(k3, (128, num_se3 * se3_dim), jnp.float32,
                            minval=-1e-3, maxval=1e-3)
    b3 = jnp.zeros((num_se3 * se3_dim,), jnp.float32)
    return (w1, b1, w2, b2, w3, b3)


if __name__ == "__main__":
    # Small config consistent with the module: chn[5]=64, dims[5]=2,
    # num_masks=4 -> num_se3=3, se3_type='se3aa' -> se3_dim=6.
    chn5, dim5 = 64, 2
    num_masks = 4
    num_se3 = num_masks - 1
    se3_dim = 6

    key = jax.random.PRNGKey(0)
    k_params, k_x1, k_x2 = jax.random.split(key, 3)
    params = init_params(k_params, chn5 * dim5 * dim5, num_se3, se3_dim)

    # Case 1: nominal small shape (batch=2), f32 matmuls.
    emb_ta = jax.random.normal(k_x1, (2, chn5, dim5, dim5), jnp.float32)
    se3s = jax.block_until_ready(
        se3_dec_forward(emb_ta, params, num_se3, se3_dim))
    ref = jax.block_until_ready(
        se3_dec_reference(emb_ta, params, num_se3, se3_dim))
    assert se3s.shape == (2, num_se3, 3, 4), se3s.shape
    assert jnp.allclose(se3s, ref, rtol=1e-4, atol=1e-4), (
        float(jnp.max(jnp.abs(se3s - ref))))

    # Case 2: batch=40 exercises row padding and a multi-step batch grid.
    emb_ta2 = jax.random.normal(k_x2, (40, chn5, dim5, dim5), jnp.float32)
    se3s2 = jax.block_until_ready(
        se3_dec_forward(emb_ta2, params, num_se3, se3_dim))
    ref2 = jax.block_until_ready(
        se3_dec_reference(emb_ta2, params, num_se3, se3_dim))
    assert se3s2.shape == (40, num_se3, 3, 4), se3s2.shape
    assert jnp.allclose(se3s2, ref2, rtol=1e-4, atol=1e-4), (
        float(jnp.max(jnp.abs(se3s2 - ref2))))

    # Case 3: bf16 matmul path (half weight DMA, 2x MXU rate on v6e/v7x).
    se3s3 = jax.block_until_ready(
        se3_dec_forward(emb_ta2, params, num_se3, se3_dim,
                        use_bf16_matmul=True))
    assert jnp.allclose(se3s3, ref2, rtol=2e-2, atol=2e-2), (
        float(jnp.max(jnp.abs(se3s3 - ref2))))

    print("KERNEL_OK")
</pallas_src>

<mosaic_0001>
module attributes {stable_mosaic.version = 11 : i64} {
  func.func @_se3dec_kernel(%arg0: i32, %arg1: memref<8x256xf32, #tpu.memory_space<vmem>>, %arg2: memref<256x256xf32, #tpu.memory_space<vmem>>, %arg3: memref<1x256xf32, #tpu.memory_space<vmem>>, %arg4: memref<256x128xf32, #tpu.memory_space<vmem>>, %arg5: memref<1x128xf32, #tpu.memory_space<vmem>>, %arg6: memref<128x768xf32, #tpu.memory_space<vmem>>, %arg7: memref<1x768xf32, #tpu.memory_space<vmem>>, %arg8: memref<8x1536xf32, #tpu.memory_space<vmem>>) attributes {dimension_semantics = [#tpu.dimension_semantics<parallel>], iteration_bounds = array<i64: 1>, scalar_prefetch = 0 : i64, scratch_operands = 0 : i64, tpu.core_type = #tpu.core_type<tc>, window_params = [{transform_indices = @transform_0, window_bounds = array<i64: 8, 256>}, {pipeline_mode = #tpu.pipeline_mode<synchronous>, transform_indices = @transform_1, window_bounds = array<i64: 256, 256>}, {pipeline_mode = #tpu.pipeline_mode<synchronous>, transform_indices = @transform_2, window_bounds = array<i64: 1, 256>}, {pipeline_mode = #tpu.pipeline_mode<synchronous>, transform_indices = @transform_3, window_bounds = array<i64: 256, 128>}, {pipeline_mode = #tpu.pipeline_mode<synchronous>, transform_indices = @transform_4, window_bounds = array<i64: 1, 128>}, {pipeline_mode = #tpu.pipeline_mode<synchronous>, transform_indices = @transform_5, window_bounds = array<i64: 128, 768>}, {pipeline_mode = #tpu.pipeline_mode<synchronous>, transform_indices = @transform_6, window_bounds = array<i64: 1, 768>}, {transform_indices = @transform_7, window_bounds = array<i64: 8, 1536>}]} {
    %c0 = arith.constant 0 : index
    %c0_0 = arith.constant 0 : index
    %0 = vector.load %arg1[%c0, %c0_0] : memref<8x256xf32, #tpu.memory_space<vmem>>, vector<8x256xf32>
    %c0_1 = arith.constant 0 : index
    %c0_2 = arith.constant 0 : index
    %1 = vector.load %arg2[%c0_1, %c0_2] : memref<256x256xf32, #tpu.memory_space<vmem>>, vector<256x256xf32>
    %cst = arith.constant dense<0.000000e+00> : vector<8x256xf32>
    %2 = tpu.matmul %0, %1, %cst {dimension_numbers = #tpu.dot_dimension_numbers<[1], [0], [0], [1], [0, 0, 1, 1], [], []>} : vector<8x256xf32>, vector<256x256xf32>, vector<8x256xf32> -> vector<8x256xf32>
    %c0_3 = arith.constant 0 : index
    %c0_4 = arith.constant 0 : index
    %3 = vector.load %arg3[%c0_3, %c0_4] : memref<1x256xf32, #tpu.memory_space<vmem>>, vector<1x256xf32>
    %4 = vector.broadcast %3 : vector<1x256xf32> to vector<8x256xf32>
    %5 = arith.addf %2, %4 : vector<8x256xf32>
    %cst_5 = arith.constant 0.000000e+00 : f32
    %6 = vector.broadcast %cst_5 : f32 to vector<8x256xf32>
    %7 = arith.maximumf %5, %6 : vector<8x256xf32>
    %c0_6 = arith.constant 0 : index
    %c0_7 = arith.constant 0 : index
    %8 = vector.load %arg4[%c0_6, %c0_7] : memref<256x128xf32, #tpu.memory_space<vmem>>, vector<256x128xf32>
    %cst_8 = arith.constant dense<0.000000e+00> : vector<8x128xf32>
    %9 = tpu.matmul %7, %8, %cst_8 {dimension_numbers = #tpu.dot_dimension_numbers<[1], [0], [0], [1], [0, 0, 1, 1], [], []>} : vector<8x256xf32>, vector<256x128xf32>, vector<8x128xf32> -> vector<8x128xf32>
    %c0_9 = arith.constant 0 : index
    %c0_10 = arith.constant 0 : index
    %10 = vector.load %arg5[%c0_9, %c0_10] : memref<1x128xf32, #tpu.memory_space<vmem>>, vector<1x128xf32>
    %11 = vector.broadcast %10 : vector<1x128xf32> to vector<8x128xf32>
    %12 = arith.addf %9, %11 : vector<8x128xf32>
    %cst_11 = arith.constant 0.000000e+00 : f32
    %13 = vector.broadcast %cst_11 : f32 to vector<8x128xf32>
    %14 = arith.maximumf %12, %13 : vector<8x128xf32>
    %c0_12 = arith.constant 0 : index
    %c0_13 = arith.constant 0 : index
    %15 = vector.load %arg6[%c0_12, %c0_13] : memref<128x768xf32, #tpu.memory_space<vmem>>, vector<128x768xf32>
    %cst_14 = arith.constant dense<0.000000e+00> : vector<8x768xf32>
    %16 = tpu.matmul %14, %15, %cst_14 {dimension_numbers = #tpu.dot_dimension_numbers<[1], [0], [0], [1], [0, 0, 1, 1], [], []>} : vector<8x128xf32>, vector<128x768xf32>, vector<8x768xf32> -> vector<8x768xf32>
    %c0_15 = arith.constant 0 : index
    %c0_16 = arith.constant 0 : index
    %17 = vector.load %arg7[%c0_15, %c0_16] : memref<1x768xf32, #tpu.memory_space<vmem>>, vector<1x768xf32>
    %18 = vector.broadcast %17 : vector<1x768xf32> to vector<8x768xf32>
    %19 = arith.addf %16, %18 : vector<8x768xf32>
    %20 = vector.extract_strided_slice %19 {offsets = [0, 0], sizes = [8, 128], strides = [1, 1]} : vector<8x768xf32> to vector<8x128xf32>
    %21 = vector.extract_strided_slice %19 {offsets = [0, 128], sizes = [8, 128], strides = [1, 1]} : vector<8x768xf32> to vector<8x128xf32>
    %22 = vector.extract_strided_slice %19 {offsets = [0, 256], sizes = [8, 128], strides = [1, 1]} : vector<8x768xf32> to vector<8x128xf32>
    %23 = vector.extract_strided_slice %19 {offsets = [0, 384], sizes = [8, 128], strides = [1, 1]} : vector<8x768xf32> to vector<8x128xf32>
    %24 = vector.extract_strided_slice %19 {offsets = [0, 512], sizes = [8, 128], strides = [1, 1]} : vector<8x768xf32> to vector<8x128xf32>
    %25 = vector.extract_strided_slice %19 {offsets = [0, 640], sizes = [8, 128], strides = [1, 1]} : vector<8x768xf32> to vector<8x128xf32>
    %26 = arith.mulf %23, %23 : vector<8x128xf32>
    %27 = arith.mulf %24, %24 : vector<8x128xf32>
    %28 = arith.addf %26, %27 : vector<8x128xf32>
    %29 = arith.mulf %25, %25 : vector<8x128xf32>
    %30 = arith.addf %28, %29 : vector<8x128xf32>
    %cst_17 = arith.constant 9.99999997E-7 : f32
    %31 = vector.broadcast %cst_17 : f32 to vector<8x128xf32>
    %32 = arith.cmpf olt, %30, %31 : vector<8x128xf32>
    %cst_18 = arith.constant 1.000000e+00 : f32
    %33 = vector.broadcast %cst_18 : f32 to vector<8x128xf32>
    %34 = arith.select %32, %33, %30 : vector<8x128xi1>, vector<8x128xf32>
    %35 = math.sqrt %34 : vector<8x128xf32>
    %cst_19 = arith.constant 6.000000e+00 : f32
    %36 = vector.broadcast %cst_19 : f32 to vector<8x128xf32>
    %37 = arith.divf %30, %36 : vector<8x128xf32>
    %cst_20 = arith.constant 1.000000e+00 : f32
    %38 = vector.broadcast %cst_20 : f32 to vector<8x128xf32>
    %39 = arith.subf %38, %37 : vector<8x128xf32>
    %40 = math.sin %35 : vector<8x128xf32>
    %41 = arith.divf %40, %35 : vector<8x128xf32>
    %42 = arith.select %32, %39, %41 : vector<8x128xi1>, vector<8x128xf32>
    %cst_21 = arith.constant 2.400000e+01 : f32
    %43 = vector.broadcast %cst_21 : f32 to vector<8x128xf32>
    %44 = arith.divf %30, %43 : vector<8x128xf32>
    %cst_22 = arith.constant 5.000000e-01 : f32
    %45 = vector.broadcast %cst_22 : f32 to vector<8x128xf32>
    %46 = arith.subf %45, %44 : vector<8x128xf32>
    %47 = math.cos %35 : vector<8x128xf32>
    %cst_23 = arith.constant 1.000000e+00 : f32
    %48 = vector.broadcast %cst_23 : f32 to vector<8x128xf32>
    %49 = arith.subf %48, %47 : vector<8x128xf32>
    %50 = arith.divf %49, %34 : vector<8x128xf32>
    %51 = arith.select %32, %46, %50 : vector<8x128xi1>, vector<8x128xf32>
    %52 = arith.mulf %42, %23 : vector<8x128xf32>
    %53 = arith.mulf %42, %24 : vector<8x128xf32>
    %54 = arith.mulf %42, %25 : vector<8x128xf32>
    %55 = arith.mulf %51, %23 : vector<8x128xf32>
    %56 = arith.mulf %55, %24 : vector<8x128xf32>
    %57 = arith.mulf %51, %23 : vector<8x128xf32>
    %58 = arith.mulf %57, %25 : vector<8x128xf32>
    %59 = arith.mulf %51, %24 : vector<8x128xf32>
    %60 = arith.mulf %59, %25 : vector<8x128xf32>
    %61 = arith.mulf %24, %24 : vector<8x128xf32>
    %62 = arith.mulf %25, %25 : vector<8x128xf32>
    %63 = arith.addf %61, %62 : vector<8x128xf32>
    %64 = arith.mulf %51, %63 : vector<8x128xf32>
    %cst_24 = arith.constant 1.000000e+00 : f32
    %65 = vector.broadcast %cst_24 : f32 to vector<8x128xf32>
    %66 = arith.subf %65, %64 : vector<8x128xf32>
    %c0_25 = arith.constant 0 : index
    %c0_26 = arith.constant 0 : index
    %67 = vector.load %arg8[%c0_25, %c0_26] : memref<8x1536xf32, #tpu.memory_space<vmem>>, vector<8x128xf32>
    tpu.vector_store %arg8[%c0_25, %c0_26], %66 {strides = array<i32>} : memref<8x1536xf32, #tpu.memory_space<vmem>>, vector<8x128xf32>,
    %68 = arith.subf %56, %54 : vector<8x128xf32>
    %c0_27 = arith.constant 0 : index
    %c128 = arith.constant 128 : index
    %69 = vector.load %arg8[%c0_27, %c128] : memref<8x1536xf32, #tpu.memory_space<vmem>>, vector<8x128xf32>
    tpu.vector_store %arg8[%c0_27, %c128], %68 {strides = array<i32>} : memref<8x1536xf32, #tpu.memory_space<vmem>>, vector<8x128xf32>,
    %70 = arith.addf %58, %53 : vector<8x128xf32>
    %c0_28 = arith.constant 0 : index
    %c256 = arith.constant 256 : index
    %71 = vector.load %arg8[%c0_28, %c256] : memref<8x1536xf32, #tpu.memory_space<vmem>>, vector<8x128xf32>
    tpu.vector_store %arg8[%c0_28, %c256], %70 {strides = array<i32>} : memref<8x1536xf32, #tpu.memory_space<vmem>>, vector<8x128xf32>,
    %c0_29 = arith.constant 0 : index
    %c384 = arith.constant 384 : index
    %72 = vector.load %arg8[%c0_29, %c384] : memref<8x1536xf32, #tpu.memory_space<vmem>>, vector<8x128xf32>
    tpu.vector_store %arg8[%c0_29, %c384], %20 {strides = array<i32>} : memref<8x1536xf32, #tpu.memory_space<vmem>>, vector<8x128xf32>,
    %73 = arith.addf %56, %54 : vector<8x128xf32>
    %c0_30 = arith.constant 0 : index
    %c512 = arith.constant 512 : index
    %74 = vector.load %arg8[%c0_30, %c512] : memref<8x1536xf32, #tpu.memory_space<vmem>>, vector<8x128xf32>
    tpu.vector_store %arg8[%c0_30, %c512], %73 {strides = array<i32>} : memref<8x1536xf32, #tpu.memory_space<vmem>>, vector<8x128xf32>,
    %75 = arith.mulf %23, %23 : vector<8x128xf32>
    %76 = arith.mulf %25, %25 : vector<8x128xf32>
    %77 = arith.addf %75, %76 : vector<8x128xf32>
    %78 = arith.mulf %51, %77 : vector<8x128xf32>
    %cst_31 = arith.constant 1.000000e+00 : f32
    %79 = vector.broadcast %cst_31 : f32 to vector<8x128xf32>
    %80 = arith.subf %79, %78 : vector<8x128xf32>
    %c0_32 = arith.constant 0 : index
    %c640 = arith.constant 640 : index
    %81 = vector.load %arg8[%c0_32, %c640] : memref<8x1536xf32, #tpu.memory_space<vmem>>, vector<8x128xf32>
    tpu.vector_store %arg8[%c0_32, %c640], %80 {strides = array<i32>} : memref<8x1536xf32, #tpu.memory_space<vmem>>, vector<8x128xf32>,
    %82 = arith.subf %60, %52 : vector<8x128xf32>
    %c0_33 = arith.constant 0 : index
    %c768 = arith.constant 768 : index
    %83 = vector.load %arg8[%c0_33, %c768] : memref<8x1536xf32, #tpu.memory_space<vmem>>, vector<8x128xf32>
    tpu.vector_store %arg8[%c0_33, %c768], %82 {strides = array<i32>} : memref<8x1536xf32, #tpu.memory_space<vmem>>, vector<8x128xf32>,
    %c0_34 = arith.constant 0 : index
    %c896 = arith.constant 896 : index
    %84 = vector.load %arg8[%c0_34, %c896] : memref<8x1536xf32, #tpu.memory_space<vmem>>, vector<8x128xf32>
    tpu.vector_store %arg8[%c0_34, %c896], %21 {strides = array<i32>} : memref<8x1536xf32, #tpu.memory_space<vmem>>, vector<8x128xf32>,
    %85 = arith.subf %58, %53 : vector<8x128xf32>
    %c0_35 = arith.constant 0 : index
    %c1024 = arith.constant 1024 : index
    %86 = vector.load %arg8[%c0_35, %c1024] : memref<8x1536xf32, #tpu.memory_space<vmem>>, vector<8x128xf32>
    tpu.vector_store %arg8[%c0_35, %c1024], %85 {strides = array<i32>} : memref<8x1536xf32, #tpu.memory_space<vmem>>, vector<8x128xf32>,
    %87 = arith.addf %60, %52 : vector<8x128xf32>
    %c0_36 = arith.constant 0 : index
    %c1152 = arith.constant 1152 : index
    %88 = vector.load %arg8[%c0_36, %c1152] : memref<8x1536xf32, #tpu.memory_space<vmem>>, vector<8x128xf32>
    tpu.vector_store %arg8[%c0_36, %c1152], %87 {strides = array<i32>} : memref<8x1536xf32, #tpu.memory_space<vmem>>, vector<8x128xf32>,
    %89 = arith.mulf %23, %23 : vector<8x128xf32>
    %90 = arith.mulf %24, %24 : vector<8x128xf32>
    %91 = arith.addf %89, %90 : vector<8x128xf32>
    %92 = arith.mulf %51, %91 : vector<8x128xf32>
    %cst_37 = arith.constant 1.000000e+00 : f32
    %93 = vector.broadcast %cst_37 : f32 to vector<8x128xf32>
    %94 = arith.subf %93, %92 : vector<8x128xf32>
    %c0_38 = arith.constant 0 : index
    %c1280 = arith.constant 1280 : index
    %95 = vector.load %arg8[%c0_38, %c1280] : memref<8x1536xf32, #tpu.memory_space<vmem>>, vector<8x128xf32>
    tpu.vector_store %arg8[%c0_38, %c1280], %94 {strides = array<i32>} : memref<8x1536xf32, #tpu.memory_space<vmem>>, vector<8x128xf32>,
    %c0_39 = arith.constant 0 : index
    %c1408 = arith.constant 1408 : index
    %96 = vector.load %arg8[%c0_39, %c1408] : memref<8x1536xf32, #tpu.memory_space<vmem>>, vector<8x128xf32>
    tpu.vector_store %arg8[%c0_39, %c1408], %22 {strides = array<i32>} : memref<8x1536xf32, #tpu.memory_space<vmem>>, vector<8x128xf32>,
    return
  }
  func.func @transform_0(%arg0: i32) -> (i32, i32) {
    %c0_i32 = arith.constant 0 : i32
    %c0_i32_0 = arith.constant 0 : i32
    return %arg0, %c0_i32 : i32, i32
  }
  func.func @transform_1(%arg0: i32) -> (i32, i32) {
    %c0_i32 = arith.constant 0 : i32
    %c0_i32_0 = arith.constant 0 : i32
    %c0_i32_1 = arith.constant 0 : i32
    return %c0_i32, %c0_i32_0 : i32, i32
  }
  func.func @transform_2(%arg0: i32) -> (i32, i32) {
    %c0_i32 = arith.constant 0 : i32
    %c0_i32_0 = arith.constant 0 : i32
    %c0_i32_1 = arith.constant 0 : i32
    return %c0_i32, %c0_i32_0 : i32, i32
  }
  func.func @transform_3(%arg0: i32) -> (i32, i32) {
    %c0_i32 = arith.constant 0 : i32
    %c0_i32_0 = arith.constant 0 : i32
    %c0_i32_1 = arith.constant 0 : i32
    return %c0_i32, %c0_i32_0 : i32, i32
  }
  func.func @transform_4(%arg0: i32) -> (i32, i32) {
    %c0_i32 = arith.constant 0 : i32
    %c0_i32_0 = arith.constant 0 : i32
    %c0_i32_1 = arith.constant 0 : i32
    return %c0_i32, %c0_i32_0 : i32, i32
  }
  func.func @transform_5(%arg0: i32) -> (i32, i32) {
    %c0_i32 = arith.constant 0 : i32
    %c0_i32_0 = arith.constant 0 : i32
    %c0_i32_1 = arith.constant 0 : i32
    return %c0_i32, %c0_i32_0 : i32, i32
  }
  func.func @transform_6(%arg0: i32) -> (i32, i32) {
    %c0_i32 = arith.constant 0 : i32
    %c0_i32_0 = arith.constant 0 : i32
    %c0_i32_1 = arith.constant 0 : i32
    return %c0_i32, %c0_i32_0 : i32, i32
  }
  func.func @transform_7(%arg0: i32) -> (i32, i32) {
    %c0_i32 = arith.constant 0 : i32
    %c0_i32_0 = arith.constant 0 : i32
    return %arg0, %c0_i32 : i32, i32
  }
}

</mosaic_0001>

<llo_original>
// kernel: tpu_custom_call.1
$region0: #{tpu_custom_call.1}
  #allocation0 [shape = 'u32[]', space=smem, size = 0x4, offset = 0x4, fixed_abs, tag = 'smem constant byte address 0x4 - core index']
  #allocation1 [shape = 'u32[144,128]{1,0:T(1,128)}', space=vmem, size = 0x12000, scoped, tag = 'internal scratch']
  %s0 = inlined_call_operand.hbm [shape: f32[8,256], index: 0, kind: input, shape index: {}]
  %s1 = inlined_call_operand.hbm [shape: f32[256,256], index: 1, kind: input, shape index: {}]
  %s2 = inlined_call_operand.vmem [shape: f32[1,256], index: 2, kind: input, shape index: {}]
  %s3 = inlined_call_operand.hbm [shape: f32[256,128], index: 3, kind: input, shape index: {}]
  %s4 = inlined_call_operand.vmem [shape: f32[1,128], index: 4, kind: input, shape index: {}]
  %s5 = inlined_call_operand.hbm [shape: f32[128,768], index: 5, kind: input, shape index: {}]
  %s6 = inlined_call_operand.vmem [shape: f32[1,768], index: 6, kind: input, shape index: {}]
  %s7 = inlined_call_operand.hbm [shape: f32[8,1536], index: 7, kind: output, shape index: {}]
  %s8 = sld [smem:[#allocation0]]
  $region54: #{tpu_custom_call.1} parent=0
    _
  %s10 = ssub.s32 1, %s8
  %s11 = scalar_select 0, %s10, %s8
  $region1: #{tpu_custom_call.1} parent=0
    #allocation2 [shape = 'u8[8192]{0}', space=vmem, size = 0x2000, scoped, tag = 'input window, operand 0, single buffered']
    #allocation3 [shape = 's32[1]{0}', space=sflag, size = 0x4, scoped, tag = 'scoped memory for tpu_custom_call.1']
    #allocation4 [shape = 's32[1]{0}', space=sflag, size = 0x4, scoped, tag = 'scoped memory for tpu_custom_call.1']
    #allocation5 [shape = 'u8[262144]{0}', space=vmem, size = 0x40000, scoped, tag = 'input window, operand 1, single buffered']
    #allocation6 [shape = 's32[1]{0}', space=sflag, size = 0x4, scoped, tag = 'scoped memory for tpu_custom_call.1']
    #allocation7 [shape = 'u8[131072]{0}', space=vmem, size = 0x20000, scoped, tag = 'input window, operand 3, single buffered']
    #allocation8 [shape = 'u8[393216]{0}', space=vmem, size = 0x60000, scoped, tag = 'input window, operand 5, single buffered']
    #allocation9 [shape = 's32[1]{0}', space=sflag, size = 0x4, scoped, tag = 'scoped memory for tpu_custom_call.1']
    #allocation10 [shape = 'u8[49152]{0}', space=vmem, size = 0xc000, scoped, tag = 'output window, operand 0, single buffered']
    %12 = vsyncpa [#allocation3], 0
    %13 = vsyncpa [#allocation6], 0
    %14 = vsyncpa [#allocation9], 0
    %15 = vsyncpa [#allocation4], 0
    // Predicated region
    $region2: #{tpu_custom_call.1} parent=1 // pred_check
      _
    $region3: #{tpu_custom_call.1} parent=1 // pred_check_branch
      %17 = sbr.rel (0) target = $region5
    $region4: #{tpu_custom_call.1} parent=1 // pred_region
      %s19 = ssub.s32 256, 256
      %20 = vsyncadd [#allocation3], %s19
      %s22 = sshll.u32 [#allocation2], 4
      %s23 = int_to_ptr.vmem [resolvable:$true] %s22
      %25 = dma.hbm_to_vmem [thread:$0]  %s0, 256, %s23, [#allocation3]
    $region5: #{tpu_custom_call.1} parent=1 // pred_fallthru
      _
    // Predicated region
    $region6: #{tpu_custom_call.1} parent=1 // pred_check
      _
    $region7: #{tpu_custom_call.1} parent=1 // pred_check_branch
      %27 = sbr.rel (0) target = $region9
    $region8: #{tpu_custom_call.1} parent=1 // pred_region
      %s29 = ssub.s32 8192, 8192
      %30 = vsyncadd [#allocation6], %s29
      %s31 = sshll.u32 [#allocation5], 4
      %s32 = int_to_ptr.vmem [resolvable:$true] %s31
      %37 = dma.hbm_to_vmem [thread:$0]  %s1, 8192, %s32, [#allocation6], 256, 256, 16
    $region9: #{tpu_custom_call.1} parent=1 // pred_fallthru
      _
    // Predicated region
    $region10: #{tpu_custom_call.1} parent=1 // pred_check
      _
    $region11: #{tpu_custom_call.1} parent=1 // pred_check_branch
      %39 = sbr.rel (0) target = $region13
    $region12: #{tpu_custom_call.1} parent=1 // pred_region
      _
    $region13: #{tpu_custom_call.1} parent=1 // pred_fallthru
      _
    // Predicated region
    $region14: #{tpu_custom_call.1} parent=1 // pred_check
      _
    $region15: #{tpu_custom_call.1} parent=1 // pred_check_branch
      %41 = sbr.rel (0) target = $region17
    $region16: #{tpu_custom_call.1} parent=1 // pred_region
      %s43 = ssub.s32 4096, 4096
      %44 = vsyncadd [#allocation6], %s43
      %s45 = sshll.u32 [#allocation7], 4
      %s46 = int_to_ptr.vmem [resolvable:$true] %s45
      %51 = dma.hbm_to_vmem [thread:$0]  %s3, 4096, %s46, [#allocation6], 128, 128, 8
    $region17: #{tpu_custom_call.1} parent=1 // pred_fallthru
      _
    // Predicated region
    $region18: #{tpu_custom_call.1} parent=1 // pred_check
      _
    $region19: #{tpu_custom_call.1} parent=1 // pred_check_branch
      %53 = sbr.rel (0) target = $region21
    $region20: #{tpu_custom_call.1} parent=1 // pred_region
      _
    $region21: #{tpu_custom_call.1} parent=1 // pred_fallthru
      _
    // Predicated region
    $region22: #{tpu_custom_call.1} parent=1 // pred_check
      _
    $region23: #{tpu_custom_call.1} parent=1 // pred_check_branch
      %55 = sbr.rel (0) target = $region25
    $region24: #{tpu_custom_call.1} parent=1 // pred_region
      %s57 = ssub.s32 12288, 12288
      %58 = vsyncadd [#allocation9], %s57
      %s59 = sshll.u32 [#allocation8], 4
      %s60 = int_to_ptr.vmem [resolvable:$true] %s59
      %65 = dma.hbm_to_vmem [thread:$0]  %s5, 12288, %s60, [#allocation9], 768, 768, 48
    $region25: #{tpu_custom_call.1} parent=1 // pred_fallthru
      _
    // Predicated region
    $region26: #{tpu_custom_call.1} parent=1 // pred_check
      _
    $region27: #{tpu_custom_call.1} parent=1 // pred_check_branch
      %67 = sbr.rel (0) target = $region29
    $region28: #{tpu_custom_call.1} parent=1 // pred_region
      _
    $region29: #{tpu_custom_call.1} parent=1 // pred_fallthru
      _
    // Predicated region
    $region30: #{tpu_custom_call.1} parent=1 // pred_check
      _
    $region31: #{tpu_custom_call.1} parent=1 // pred_check_branch
      %69 = sbr.rel (0) target = $region33
    $region32: #{tpu_custom_call.1} parent=1 // pred_region
      %70 = dma.done [#allocation3], 256
    $region33: #{tpu_custom_call.1} parent=1 // pred_fallthru
      _
    // Predicated region
    $region34: #{tpu_custom_call.1} parent=1 // pred_check
      _
    $region35: #{tpu_custom_call.1} parent=1 // pred_check_branch
      %72 = sbr.rel (0) target = $region37
    $region36: #{tpu_custom_call.1} parent=1 // pred_region
      %73 = dma.done [#allocation6], 8192
    $region37: #{tpu_custom_call.1} parent=1 // pred_fallthru
      _
    // Predicated region
    $region38: #{tpu_custom_call.1} parent=1 // pred_check
      _
    $region39: #{tpu_custom_call.1} parent=1 // pred_check_branch
      %75 = sbr.rel (0) target = $region41
    $region40: #{tpu_custom_call.1} parent=1 // pred_region
      %76 = dma.done [#allocation6], 4096
    $region41: #{tpu_custom_call.1} parent=1 // pred_fallthru
      _
    // Predicated region
    $region42: #{tpu_custom_call.1} parent=1 // pred_check
      _
    $region43: #{tpu_custom_call.1} parent=1 // pred_check_branch
      %78 = sbr.rel (0) target = $region45
    $region44: #{tpu_custom_call.1} parent=1 // pred_region
      %79 = dma.done [#allocation9], 12288
    $region45: #{tpu_custom_call.1} parent=1 // pred_fallthru
      _
    %v80 = vld [vmem:[#allocation2] sm:$0xff]
    %v81 = vld [vmem:[#allocation2 + $0x8] sm:$0xff]
    %v82 = vld [vmem:[#allocation5] sm:$0xff]
    %v83 = vld [vmem:[#allocation5 + $0x8] sm:$0xff]
    %v84 = vld [vmem:[#allocation5 + $0x10] sm:$0xff]
    %v85 = vld [vmem:[#allocation5 + $0x18] sm:$0xff]
    %v86 = vld [vmem:[#allocation5 + $0x20] sm:$0xff]
    %v87 = vld [vmem:[#allocation5 + $0x28] sm:$0xff]
    %v88 = vld [vmem:[#allocation5 + $0x30] sm:$0xff]
    %v89 = vld [vmem:[#allocation5 + $0x38] sm:$0xff]
    %v90 = vld [vmem:[#allocation5 + $0x40] sm:$0xff]
    %v91 = vld [vmem:[#allocation5 + $0x48] sm:$0xff]
    %v92 = vld [vmem:[#allocation5 + $0x50] sm:$0xff]
    %v93 = vld [vmem:[#allocation5 + $0x58] sm:$0xff]
    %v94 = vld [vmem:[#allocation5 + $0x60] sm:$0xff]
    %v95 = vld [vmem:[#allocation5 + $0x68] sm:$0xff]
    %v96 = vld [vmem:[#allocation5 + $0x70] sm:$0xff]
    %v97 = vld [vmem:[#allocation5 + $0x78] sm:$0xff]
    %v98 = vld [vmem:[#allocation5 + $0x80] sm:$0xff]
    %v99 = vld [vmem:[#allocation5 + $0x88] sm:$0xff]
    %v100 = vld [vmem:[#allocation5 + $0x90] sm:$0xff]
    %v101 = vld [vmem:[#allocation5 + $0x98] sm:$0xff]
    %v102 = vld [vmem:[#allocation5 + $0xa0] sm:$0xff]
    %v103 = vld [vmem:[#allocation5 + $0xa8] sm:$0xff]
    %v104 = vld [vmem:[#allocation5 + $0xb0] sm:$0xff]
    %v105 = vld [vmem:[#allocation5 + $0xb8] sm:$0xff]
    %v106 = vld [vmem:[#allocation5 + $0xc0] sm:$0xff]
    %v107 = vld [vmem:[#allocation5 + $0xc8] sm:$0xff]
    %v108 = vld [vmem:[#allocation5 + $0xd0] sm:$0xff]
    %v109 = vld [vmem:[#allocation5 + $0xd8] sm:$0xff]
    %v110 = vld [vmem:[#allocation5 + $0xe0] sm:$0xff]
    %v111 = vld [vmem:[#allocation5 + $0xe8] sm:$0xff]
    %v112 = vld [vmem:[#allocation5 + $0xf0] sm:$0xff]
    %v113 = vld [vmem:[#allocation5 + $0xf8] sm:$0xff]
    %v114 = vld [vmem:[#allocation5 + $0x100] sm:$0xff]
    %v115 = vld [vmem:[#allocation5 + $0x108] sm:$0xff]
    %v116 = vld [vmem:[#allocation5 + $0x110] sm:$0xff]
    %v117 = vld [vmem:[#allocation5 + $0x118] sm:$0xff]
    %v118 = vld [vmem:[#allocation5 + $0x120] sm:$0xff]
    %v119 = vld [vmem:[#allocation5 + $0x128] sm:$0xff]
    %v120 = vld [vmem:[#allocation5 + $0x130] sm:$0xff]
    %v121 = vld [vmem:[#allocation5 + $0x138] sm:$0xff]
    %v122 = vld [vmem:[#allocation5 + $0x140] sm:$0xff]
    %v123 = vld [vmem:[#allocation5 + $0x148] sm:$0xff]
    %v124 = vld [vmem:[#allocation5 + $0x150] sm:$0xff]
    %v125 = vld [vmem:[#allocation5 + $0x158] sm:$0xff]
    %v126 = vld [vmem:[#allocation5 + $0x160] sm:$0xff]
    %v127 = vld [vmem:[#allocation5 + $0x168] sm:$0xff]
    %v128 = vld [vmem:[#allocation5 + $0x170] sm:$0xff]
    %v129 = vld [vmem:[#allocation5 + $0x178] sm:$0xff]
    %v130 = vld [vmem:[#allocation5 + $0x180] sm:$0xff]
    %v131 = vld [vmem:[#allocation5 + $0x188] sm:$0xff]
    %v132 = vld [vmem:[#allocation5 + $0x190] sm:$0xff]
    %v133 = vld [vmem:[#allocation5 + $0x198] sm:$0xff]
    %v134 = vld [vmem:[#allocation5 + $0x1a0] sm:$0xff]
    %v135 = vld [vmem:[#allocation5 + $0x1a8] sm:$0xff]
    %v136 = vld [vmem:[#allocation5 + $0x1b0] sm:$0xff]
    %v137 = vld [vmem:[#allocation5 + $0x1b8] sm:$0xff]
    %v138 = vld [vmem:[#allocation5 + $0x1c0] sm:$0xff]
    %v139 = vld [vmem:[#allocation5 + $0x1c8] sm:$0xff]
    %v140 = vld [vmem:[#allocation5 + $0x1d0] sm:$0xff]
    %v141 = vld [vmem:[#allocation5 + $0x1d8] sm:$0xff]
    %v142 = vld [vmem:[#allocation5 + $0x1e0] sm:$0xff]
    %v143 = vld [vmem:[#allocation5 + $0x1e8] sm:$0xff]
    %v144 = vld [vmem:[#allocation5 + $0x1f0] sm:$0xff]
    %v145 = vld [vmem:[#allocation5 + $0x1f8] sm:$0xff]
    %v146 = vld [vmem:[%s2] sm:$0x3]
    %v148 = vlaneseq
    %v149 = vshrl.u32 %v148, 7
    %v150 = vsub.s32 0, %v149
    %v151 = vrot.slane %v146, %v150
    %v152 = vlaneseq
    %v153 = vshrl.u32 %v152, 7
    %v154 = vsub.s32 1, %v153
    %v155 = vrot.slane %v146, %v154
    %158 = vmatprep.subr.mxu0 %v83
    %159 = vmatpush1.msra.mxu0 %v82
    %160 = vmatprep.subr.mxu0 %v85
    %161 = vmatpush1.msra.mxu0 %v84
    %162 = vmatprep.subr.mxu0 %v87
    %163 = vmatpush1.msra.mxu0 %v86
    %164 = vmatprep.subr.mxu0 %v89
    %165 = vmatpush1.msra.mxu0 %v88
    %166 = vmatprep.subr.mxu0 %v91
    %167 = vmatpush1.msra.mxu0 %v90
    %168 = vmatprep.subr.mxu0 %v93
    %169 = vmatpush1.msra.mxu0 %v92
    %170 = vmatprep.subr.mxu0 %v95
    %171 = vmatpush1.msra.mxu0 %v94
    %172 = vmatprep.subr.mxu0 %v97
    %173 = vmatpush1.msra.mxu0 %v96
    %174 = vmatprep.subr.mxu0 %v99
    %175 = vmatpush1.msra.mxu0 %v98
    %176 = vmatprep.subr.mxu0 %v101
    %177 = vmatpush1.msra.mxu0 %v100
    %178 = vmatprep.subr.mxu0 %v103
    %179 = vmatpush1.msra.mxu0 %v102
    %180 = vmatprep.subr.mxu0 %v105
    %181 = vmatpush1.msra.mxu0 %v104
    %182 = vmatprep.subr.mxu0 %v107
    %183 = vmatpush1.msra.mxu0 %v106
    %184 = vmatprep.subr.mxu0 %v109
    %185 = vmatpush1.msra.mxu0 %v108
    %186 = vmatprep.subr.mxu0 %v111
    %187 = vmatpush1.msra.mxu0 %v110
    %188 = vmatprep.subr.mxu0 %v113
    %189 = vmatpush1.msra.mxu0 %v112
    %190 = vmatprep.subr.mxu0 %v115
    %191 = vmatpush1.msra.mxu0 %v114
    %192 = vmatprep.subr.mxu0 %v117
    %193 = vmatpush1.msra.mxu0 %v116
    %194 = vmatprep.subr.mxu0 %v119
    %195 = vmatpush1.msra.mxu0 %v118
    %196 = vmatprep.subr.mxu0 %v121
    %197 = vmatpush1.msra.mxu0 %v120
    %198 = vmatprep.subr.mxu0 %v123
    %199 = vmatpush1.msra.mxu0 %v122
    %200 = vmatprep.subr.mxu0 %v125
    %201 = vmatpush1.msra.mxu0 %v124
    %202 = vmatprep.subr.mxu0 %v127
    %203 = vmatpush1.msra.mxu0 %v126
    %204 = vmatprep.subr.mxu0 %v129
    %205 = vmatpush1.msra.mxu0 %v128
    %206 = vmatprep.subr.mxu0 %v131
    %207 = vmatpush1.msra.mxu0 %v130
    %208 = vmatprep.subr.mxu0 %v133
    %209 = vmatpush1.msra.mxu0 %v132
    %210 = vmatprep.subr.mxu0 %v135
    %211 = vmatpush1.msra.mxu0 %v134
    %212 = vmatprep.subr.mxu0 %v137
    %213 = vmatpush1.msra.mxu0 %v136
    %214 = vmatprep.subr.mxu0 %v139
    %215 = vmatpush1.msra.mxu0 %v138
    %216 = vmatprep.subr.mxu0 %v141
    %217 = vmatpush1.msra.mxu0 %v140
    %218 = vmatprep.subr.mxu0 %v143
    %219 = vmatpush1.msra.mxu0 %v142
    %220 = vmatprep.subr.mxu0 %v145
    %221 = vmatpush1.msra.mxu0 %v144
    %222 = vmatprep.mubr.f32.mxu0 %v81
    %223 = vmatmul.mubr.f32.gmra.mrb[0].mxu0 %v80
    %v224 = vpop.f32.mrb[0].mxu0
    %v225 = vadd.f32 %v151, %v224
    %v226 = vpop.f32.mrb[0].mxu0
    %v227 = vadd.f32 %v155, %v226
    %228 = vdwg.mxu0
    %v229 = vmax.f32 %v225, 0.0
    %v230 = vmax.f32 %v227, 0.0
    %v231 = vld [vmem:[#allocation7] sm:$0xff]
    %v232 = vld [vmem:[#allocation7 + $0x8] sm:$0xff]
    %v233 = vld [vmem:[#allocation7 + $0x10] sm:$0xff]
    %v234 = vld [vmem:[#allocation7 + $0x18] sm:$0xff]
    %v235 = vld [vmem:[#allocation7 + $0x20] sm:$0xff]
    %v236 = vld [vmem:[#allocation7 + $0x28] sm:$0xff]
    %v237 = vld [vmem:[#allocation7 + $0x30] sm:$0xff]
    %v238 = vld [vmem:[#allocation7 + $0x38] sm:$0xff]
    %v239 = vld [vmem:[#allocation7 + $0x40] sm:$0xff]
    %v240 = vld [vmem:[#allocation7 + $0x48] sm:$0xff]
    %v241 = vld [vmem:[#allocation7 + $0x50] sm:$0xff]
    %v242 = vld [vmem:[#allocation7 + $0x58] sm:$0xff]
    %v243 = vld [vmem:[#allocation7 + $0x60] sm:$0xff]
    %v244 = vld [vmem:[#allocation7 + $0x68] sm:$0xff]
    %v245 = vld [vmem:[#allocation7 + $0x70] sm:$0xff]
    %v246 = vld [vmem:[#allocation7 + $0x78] sm:$0xff]
    %v247 = vld [vmem:[#allocation7 + $0x80] sm:$0xff]
    %v248 = vld [vmem:[#allocation7 + $0x88] sm:$0xff]
    %v249 = vld [vmem:[#allocation7 + $0x90] sm:$0xff]
    %v250 = vld [vmem:[#allocation7 + $0x98] sm:$0xff]
    %v251 = vld [vmem:[#allocation7 + $0xa0] sm:$0xff]
    %v252 = vld [vmem:[#allocation7 + $0xa8] sm:$0xff]
    %v253 = vld [vmem:[#allocation7 + $0xb0] sm:$0xff]
    %v254 = vld [vmem:[#allocation7 + $0xb8] sm:$0xff]
    %v255 = vld [vmem:[#allocation7 + $0xc0] sm:$0xff]
    %v256 = vld [vmem:[#allocation7 + $0xc8] sm:$0xff]
    %v257 = vld [vmem:[#allocation7 + $0xd0] sm:$0xff]
    %v258 = vld [vmem:[#allocation7 + $0xd8] sm:$0xff]
    %v259 = vld [vmem:[#allocation7 + $0xe0] sm:$0xff]
    %v260 = vld [vmem:[#allocation7 + $0xe8] sm:$0xff]
    %v261 = vld [vmem:[#allocation7 + $0xf0] sm:$0xff]
    %v262 = vld [vmem:[#allocation7 + $0xf8] sm:$0xff]
    %v263 = vld [vmem:[%s4] sm:$0x1]
    %v265 = vlaneseq
    %v266 = vshrl.u32 %v265, 7
    %v267 = vsub.s32 0, %v266
    %v268 = vrot.slane %v263, %v267
    %270 = vmatprep.subr.mxu0 0.0
    %271 = vmatpush1.msra.mxu0 %v231
    %272 = vmatprep.subr.mxu0 0.0
    %273 = vmatpush1.msra.mxu0 %v232
    %274 = vmatprep.subr.mxu0 0.0
    %275 = vmatpush1.msra.mxu0 %v233
    %276 = vmatprep.subr.mxu0 0.0
    %277 = vmatpush1.msra.mxu0 %v234
    %278 = vmatprep.subr.mxu0 0.0
    %279 = vmatpush1.msra.mxu0 %v235
    %280 = vmatprep.subr.mxu0 0.0
    %281 = vmatpush1.msra.mxu0 %v236
    %282 = vmatprep.subr.mxu0 0.0
    %283 = vmatpush1.msra.mxu0 %v237
    %284 = vmatprep.subr.mxu0 0.0
    %285 = vmatpush1.msra.mxu0 %v238
    %286 = vmatprep.subr.mxu0 0.0
    %287 = vmatpush1.msra.mxu0 %v239
    %288 = vmatprep.subr.mxu0 0.0
    %289 = vmatpush1.msra.mxu0 %v240
    %290 = vmatprep.subr.mxu0 0.0
    %291 = vmatpush1.msra.mxu0 %v241
    %292 = vmatprep.subr.mxu0 0.0
    %293 = vmatpush1.msra.mxu0 %v242
    %294 = vmatprep.subr.mxu0 0.0
    %295 = vmatpush1.msra.mxu0 %v243
    %296 = vmatprep.subr.mxu0 0.0
    %297 = vmatpush1.msra.mxu0 %v244
    %298 = vmatprep.subr.mxu0 0.0
    %299 = vmatpush1.msra.mxu0 %v245
    %300 = vmatprep.subr.mxu0 0.0
    %301 = vmatpush1.msra.mxu0 %v246
    %302 = vmatprep.subr.mxu0 0.0
    %303 = vmatpush1.msra.mxu0 %v247
    %304 = vmatprep.subr.mxu0 0.0
    %305 = vmatpush1.msra.mxu0 %v248
    %306 = vmatprep.subr.mxu0 0.0
    %307 = vmatpush1.msra.mxu0 %v249
    %308 = vmatprep.subr.mxu0 0.0
    %309 = vmatpush1.msra.mxu0 %v250
    %310 = vmatprep.subr.mxu0 0.0
    %311 = vmatpush1.msra.mxu0 %v251
    %312 = vmatprep.subr.mxu0 0.0
    %313 = vmatpush1.msra.mxu0 %v252
    %314 = vmatprep.subr.mxu0 0.0
    %315 = vmatpush1.msra.mxu0 %v253
    %316 = vmatprep.subr.mxu0 0.0
    %317 = vmatpush1.msra.mxu0 %v254
    %318 = vmatprep.subr.mxu0 0.0
    %319 = vmatpush1.msra.mxu0 %v255
    %320 = vmatprep.subr.mxu0 0.0
    %321 = vmatpush1.msra.mxu0 %v256
    %322 = vmatprep.subr.mxu0 0.0
    %323 = vmatpush1.msra.mxu0 %v257
    %324 = vmatprep.subr.mxu0 0.0
    %325 = vmatpush1.msra.mxu0 %v258
    %326 = vmatprep.subr.mxu0 0.0
    %327 = vmatpush1.msra.mxu0 %v259
    %328 = vmatprep.subr.mxu0 0.0
    %329 = vmatpush1.msra.mxu0 %v260
    %330 = vmatprep.subr.mxu0 0.0
    %331 = vmatpush1.msra.mxu0 %v261
    %332 = vmatprep.subr.mxu0 0.0
    %333 = vmatpush1.msra.mxu0 %v262
    %334 = vmatprep.mubr.f32.mxu0 %v230
    %335 = vmatmul.mubr.f32.gmra.mrb[0].mxu0 %v229
    %v336 = vpop.f32.mrb[0].mxu0
    %v337 = vadd.f32 %v268, %v336
    %v338 = vpop.f32.mrb[0].mxu0
    %339 = vdwg.mxu0
    %v340 = vmax.f32 %v337, 0.0
    %v341 = vld [vmem:[#allocation8] sm:$0xff]
    %v342 = vld [vmem:[#allocation8 + $0x8] sm:$0xff]
    %v343 = vld [vmem:[#allocation8 + $0x10] sm:$0xff]
    %v344 = vld [vmem:[#allocation8 + $0x18] sm:$0xff]
    %v345 = vld [vmem:[#allocation8 + $0x20] sm:$0xff]
    %v346 = vld [vmem:[#allocation8 + $0x28] sm:$0xff]
    %v347 = vld [vmem:[#allocation8 + $0x30] sm:$0xff]
    %v348 = vld [vmem:[#allocation8 + $0x38] sm:$0xff]
    %v349 = vld [vmem:[#allocation8 + $0x40] sm:$0xff]
    %v350 = vld [vmem:[#allocation8 + $0x48] sm:$0xff]
    %v351 = vld [vmem:[#allocation8 + $0x50] sm:$0xff]
    %v352 = vld [vmem:[#allocation8 + $0x58] sm:$0xff]
    %v353 = vld [vmem:[#allocation8 + $0x60] sm:$0xff]
    %v354 = vld [vmem:[#allocation8 + $0x68] sm:$0xff]
    %v355 = vld [vmem:[#allocation8 + $0x70] sm:$0xff]
    %v356 = vld [vmem:[#allocation8 + $0x78] sm:$0xff]
    %v357 = vld [vmem:[#allocation8 + $0x80] sm:$0xff]
    %v358 = vld [vmem:[#allocation8 + $0x88] sm:$0xff]
    %v359 = vld [vmem:[#allocation8 + $0x90] sm:$0xff]
    %v360 = vld [vmem:[#allocation8 + $0x98] sm:$0xff]
    %v361 = vld [vmem:[#allocation8 + $0xa0] sm:$0xff]
    %v362 = vld [vmem:[#allocation8 + $0xa8] sm:$0xff]
    %v363 = vld [vmem:[#allocation8 + $0xb0] sm:$0xff]
    %v364 = vld [vmem:[#allocation8 + $0xb8] sm:$0xff]
    %v365 = vld [vmem:[#allocation8 + $0xc0] sm:$0xff]
    %v366 = vld [vmem:[#allocation8 + $0xc8] sm:$0xff]
    %v367 = vld [vmem:[#allocation8 + $0xd0] sm:$0xff]
    %v368 = vld [vmem:[#allocation8 + $0xd8] sm:$0xff]
    %v369 = vld [vmem:[#allocation8 + $0xe0] sm:$0xff]
    %v370 = vld [vmem:[#allocation8 + $0xe8] sm:$0xff]
    %v371 = vld [vmem:[#allocation8 + $0xf0] sm:$0xff]
    %v372 = vld [vmem:[#allocation8 + $0xf8] sm:$0xff]
    %v373 = vld [vmem:[#allocation8 + $0x100] sm:$0xff]
    %v374 = vld [vmem:[#allocation8 + $0x108] sm:$0xff]
    %v375 = vld [vmem:[#allocation8 + $0x110] sm:$0xff]
    %v376 = vld [vmem:[#allocation8 + $0x118] sm:$0xff]
    %v377 = vld [vmem:[#allocation8 + $0x120] sm:$0xff]
    %v378 = vld [vmem:[#allocation8 + $0x128] sm:$0xff]
    %v379 = vld [vmem:[#allocation8 + $0x130] sm:$0xff]
    %v380 = vld [vmem:[#allocation8 + $0x138] sm:$0xff]
    %v381 = vld [vmem:[#allocation8 + $0x140] sm:$0xff]
    %v382 = vld [vmem:[#allocation8 + $0x148] sm:$0xff]
    %v383 = vld [vmem:[#allocation8 + $0x150] sm:$0xff]
    %v384 = vld [vmem:[#allocation8 + $0x158] sm:$0xff]
    %v385 = vld [vmem:[#allocation8 + $0x160] sm:$0xff]
    %v386 = vld [vmem:[#allocation8 + $0x168] sm:$0xff]
    %v387 = vld [vmem:[#allocation8 + $0x170] sm:$0xff]
    %v388 = vld [vmem:[#allocation8 + $0x178] sm:$0xff]
    %v389 = vld [vmem:[#allocation8 + $0x180] sm:$0xff]
    %v390 = vld [vmem:[#allocation8 + $0x188] sm:$0xff]
    %v391 = vld [vmem:[#allocation8 + $0x190] sm:$0xff]
    %v392 = vld [vmem:[#allocation8 + $0x198] sm:$0xff]
    %v393 = vld [vmem:[#allocation8 + $0x1a0] sm:$0xff]
    %v394 = vld [vmem:[#allocation8 + $0x1a8] sm:$0xff]
    %v395 = vld [vmem:[#allocation8 + $0x1b0] sm:$0xff]
    %v396 = vld [vmem:[#allocation8 + $0x1b8] sm:$0xff]
    %v397 = vld [vmem:[#allocation8 + $0x1c0] sm:$0xff]
    %v398 = vld [vmem:[#allocation8 + $0x1c8] sm:$0xff]
    %v399 = vld [vmem:[#allocation8 + $0x1d0] sm:$0xff]
    %v400 = vld [vmem:[#allocation8 + $0x1d8] sm:$0xff]
    %v401 = vld [vmem:[#allocation8 + $0x1e0] sm:$0xff]
    %v402 = vld [vmem:[#allocation8 + $0x1e8] sm:$0xff]
    %v403 = vld [vmem:[#allocation8 + $0x1f0] sm:$0xff]
    %v404 = vld [vmem:[#allocation8 + $0x1f8] sm:$0xff]
    %v405 = vld [vmem:[#allocation8 + $0x200] sm:$0xff]
    %v406 = vld [vmem:[#allocation8 + $0x208] sm:$0xff]
    %v407 = vld [vmem:[#allocation8 + $0x210] sm:$0xff]
    %v408 = vld [vmem:[#allocation8 + $0x218] sm:$0xff]
    %v409 = vld [vmem:[#allocation8 + $0x220] sm:$0xff]
    %v410 = vld [vmem:[#allocation8 + $0x228] sm:$0xff]
    %v411 = vld [vmem:[#allocation8 + $0x230] sm:$0xff]
    %v412 = vld [vmem:[#allocation8 + $0x238] sm:$0xff]
    %v413 = vld [vmem:[#allocation8 + $0x240] sm:$0xff]
    %v414 = vld [vmem:[#allocation8 + $0x248] sm:$0xff]
    %v415 = vld [vmem:[#allocation8 + $0x250] sm:$0xff]
    %v416 = vld [vmem:[#allocation8 + $0x258] sm:$0xff]
    %v417 = vld [vmem:[#allocation8 + $0x260] sm:$0xff]
    %v418 = vld [vmem:[#allocation8 + $0x268] sm:$0xff]
    %v419 = vld [vmem:[#allocation8 + $0x270] sm:$0xff]
    %v420 = vld [vmem:[#allocation8 + $0x278] sm:$0xff]
    %v421 = vld [vmem:[#allocation8 + $0x280] sm:$0xff]
    %v422 = vld [vmem:[#allocation8 + $0x288] sm:$0xff]
    %v423 = vld [vmem:[#allocation8 + $0x290] sm:$0xff]
    %v424 = vld [vmem:[#allocation8 + $0x298] sm:$0xff]
    %v425 = vld [vmem:[#allocation8 + $0x2a0] sm:$0xff]
    %v426 = vld [vmem:[#allocation8 + $0x2a8] sm:$0xff]
    %v427 = vld [vmem:[#allocation8 + $0x2b0] sm:$0xff]
    %v428 = vld [vmem:[#allocation8 + $0x2b8] sm:$0xff]
    %v429 = vld [vmem:[#allocation8 + $0x2c0] sm:$0xff]
    %v430 = vld [vmem:[#allocation8 + $0x2c8] sm:$0xff]
    %v431 = vld [vmem:[#allocation8 + $0x2d0] sm:$0xff]
    %v432 = vld [vmem:[#allocation8 + $0x2d8] sm:$0xff]
    %v433 = vld [vmem:[#allocation8 + $0x2e0] sm:$0xff]
    %v434 = vld [vmem:[#allocation8 + $0x2e8] sm:$0xff]
    %v435 = vld [vmem:[#allocation8 + $0x2f0] sm:$0xff]
    %v436 = vld [vmem:[#allocation8 + $0x2f8] sm:$0xff]
    %v437 = vld [vmem:[%s6] sm:$0x3f]
    %v439 = vlaneseq
    %v440 = vshrl.u32 %v439, 7
    %v441 = vsub.s32 0, %v440
    %v442 = vrot.slane %v437, %v441
    %v443 = vlaneseq
    %v444 = vshrl.u32 %v443, 7
    %v445 = vsub.s32 1, %v444
    %v446 = vrot.slane %v437, %v445
    %v447 = vlaneseq
    %v448 = vshrl.u32 %v447, 7
    %v449 = vsub.s32 2, %v448
    %v450 = vrot.slane %v437, %v449
    %v451 = vlaneseq
    %v452 = vshrl.u32 %v451, 7
    %v453 = vsub.s32 3, %v452
    %v454 = vrot.slane %v437, %v453
    %v455 = vlaneseq
    %v456 = vshrl.u32 %v455, 7
    %v457 = vsub.s32 4, %v456
    %v458 = vrot.slane %v437, %v457
    %v459 = vlaneseq
    %v460 = vshrl.u32 %v459, 7
    %v461 = vsub.s32 5, %v460
    %v462 = vrot.slane %v437, %v461
    %469 = vmatprep.subr.mxu0 %v342
    %470 = vmatpush1.msra.mxu0 %v341
    %471 = vmatprep.subr.mxu0 %v348
    %472 = vmatpush1.msra.mxu0 %v347
    %473 = vmatprep.subr.mxu0 %v354
    %474 = vmatpush1.msra.mxu0 %v353
    %475 = vmatprep.subr.mxu0 %v360
    %476 = vmatpush1.msra.mxu0 %v359
    %477 = vmatprep.subr.mxu0 %v366
    %478 = vmatpush1.msra.mxu0 %v365
    %479 = vmatprep.subr.mxu0 %v372
    %480 = vmatpush1.msra.mxu0 %v371
    %481 = vmatprep.subr.mxu0 %v378
    %482 = vmatpush1.msra.mxu0 %v377
    %483 = vmatprep.subr.mxu0 %v384
    %484 = vmatpush1.msra.mxu0 %v383
    %485 = vmatprep.subr.mxu0 %v390
    %486 = vmatpush1.msra.mxu0 %v389
    %487 = vmatprep.subr.mxu0 %v396
    %488 = vmatpush1.msra.mxu0 %v395
    %489 = vmatprep.subr.mxu0 %v402
    %490 = vmatpush1.msra.mxu0 %v401
    %491 = vmatprep.subr.mxu0 %v408
    %492 = vmatpush1.msra.mxu0 %v407
    %493 = vmatprep.subr.mxu0 %v414
    %494 = vmatpush1.msra.mxu0 %v413
    %495 = vmatprep.subr.mxu0 %v420
    %496 = vmatpush1.msra.mxu0 %v419
    %497 = vmatprep.subr.mxu0 %v426
    %498 = vmatpush1.msra.mxu0 %v425
    %499 = vmatprep.subr.mxu0 %v432
    %500 = vmatpush1.msra.mxu0 %v431
    %501 = vmatprep.subr.mxu0 0.0
    %502 = vmatpush1.msra.mxu0 0.0
    %503 = vmatprep.subr.mxu0 0.0
    %504 = vmatpush1.msra.mxu0 0.0
    %505 = vmatprep.subr.mxu0 0.0
    %506 = vmatpush1.msra.mxu0 0.0
    %507 = vmatprep.subr.mxu0 0.0
    %508 = vmatpush1.msra.mxu0 0.0
    %509 = vmatprep.subr.mxu0 0.0
    %510 = vmatpush1.msra.mxu0 0.0
    %511 = vmatprep.subr.mxu0 0.0
    %512 = vmatpush1.msra.mxu0 0.0
    %513 = vmatprep.subr.mxu0 0.0
    %514 = vmatpush1.msra.mxu0 0.0
    %515 = vmatprep.subr.mxu0 0.0
    %516 = vmatpush1.msra.mxu0 0.0
    %517 = vmatprep.subr.mxu0 0.0
    %518 = vmatpush1.msra.mxu0 0.0
    %519 = vmatprep.subr.mxu0 0.0
    %520 = vmatpush1.msra.mxu0 0.0
    %521 = vmatprep.subr.mxu0 0.0
    %522 = vmatpush1.msra.mxu0 0.0
    %523 = vmatprep.subr.mxu0 0.0
    %524 = vmatpush1.msra.mxu0 0.0
    %525 = vmatprep.subr.mxu0 0.0
    %526 = vmatpush1.msra.mxu0 0.0
    %527 = vmatprep.subr.mxu0 0.0
    %528 = vmatpush1.msra.mxu0 0.0
    %529 = vmatprep.subr.mxu0 0.0
    %530 = vmatpush1.msra.mxu0 0.0
    %531 = vmatprep.subr.mxu0 0.0
    %532 = vmatpush1.msra.mxu0 0.0
    %533 = vmatprep.mubr.f32.mxu0 0.0
    %534 = vmatmul.mubr.f32.gmra.mrb[0].mxu0 %v340
    %v535 = vpop.f32.mrb[0].mxu0
    %v536 = vadd.f32 %v442, %v535
    %v537 = vpop.f32.mrb[0].mxu0
    %v538 = vadd.f32 %v446, %v537
    %539 = vdwg.mxu0
    %540 = vmatprep.subr.mxu0 %v344
    %541 = vmatpush1.msra.mxu0 %v343
    %542 = vmatprep.subr.mxu0 %v350
    %543 = vmatpush1.msra.mxu0 %v349
    %544 = vmatprep.subr.mxu0 %v356
    %545 = vmatpush1.msra.mxu0 %v355
    %546 = vmatprep.subr.mxu0 %v362
    %547 = vmatpush1.msra.mxu0 %v361
    %548 = vmatprep.subr.mxu0 %v368
    %549 = vmatpush1.msra.mxu0 %v367
    %550 = vmatprep.subr.mxu0 %v374
    %551 = vmatpush1.msra.mxu0 %v373
    %552 = vmatprep.subr.mxu0 %v380
    %553 = vmatpush1.msra.mxu0 %v379
    %554 = vmatprep.subr.mxu0 %v386
    %555 = vmatpush1.msra.mxu0 %v385
    %556 = vmatprep.subr.mxu0 %v392
    %557 = vmatpush1.msra.mxu0 %v391
    %558 = vmatprep.subr.mxu0 %v398
    %559 = vmatpush1.msra.mxu0 %v397
    %560 = vmatprep.subr.mxu0 %v404
    %561 = vmatpush1.msra.mxu0 %v403
    %562 = vmatprep.subr.mxu0 %v410
    %563 = vmatpush1.msra.mxu0 %v409
    %564 = vmatprep.subr.mxu0 %v416
    %565 = vmatpush1.msra.mxu0 %v415
    %566 = vmatprep.subr.mxu0 %v422
    %567 = vmatpush1.msra.mxu0 %v421
    %568 = vmatprep.subr.mxu0 %v428
    %569 = vmatpush1.msra.mxu0 %v427
    %570 = vmatprep.subr.mxu0 %v434
    %571 = vmatpush1.msra.mxu0 %v433
    %572 = vmatprep.subr.mxu0 0.0
    %573 = vmatpush1.msra.mxu0 0.0
    %574 = vmatprep.subr.mxu0 0.0
    %575 = vmatpush1.msra.mxu0 0.0
    %576 = vmatprep.subr.mxu0 0.0
    %577 = vmatpush1.msra.mxu0 0.0
    %578 = vmatprep.subr.mxu0 0.0
    %579 = vmatpush1.msra.mxu0 0.0
    %580 = vmatprep.subr.mxu0 0.0
    %581 = vmatpush1.msra.mxu0 0.0
    %582 = vmatprep.subr.mxu0 0.0
    %583 = vmatpush1.msra.mxu0 0.0
    %584 = vmatprep.subr.mxu0 0.0
    %585 = vmatpush1.msra.mxu0 0.0
    %586 = vmatprep.subr.mxu0 0.0
    %587 = vmatpush1.msra.mxu0 0.0
    %588 = vmatprep.subr.mxu0 0.0
    %589 = vmatpush1.msra.mxu0 0.0
    %590 = vmatprep.subr.mxu0 0.0
    %591 = vmatpush1.msra.mxu0 0.0
    %592 = vmatprep.subr.mxu0 0.0
    %593 = vmatpush1.msra.mxu0 0.0
    %594 = vmatprep.subr.mxu0 0.0
    %595 = vmatpush1.msra.mxu0 0.0
    %596 = vmatprep.subr.mxu0 0.0
    %597 = vmatpush1.msra.mxu0 0.0
    %598 = vmatprep.subr.mxu0 0.0
    %599 = vmatpush1.msra.mxu0 0.0
    %600 = vmatprep.subr.mxu0 0.0
    %601 = vmatpush1.msra.mxu0 0.0
    %602 = vmatprep.subr.mxu0 0.0
    %603 = vmatpush1.msra.mxu0 0.0
    %604 = vmatprep.mubr.f32.mxu0 0.0
    %605 = vmatmul.mubr.f32.gmra.mrb[0].mxu0 %v340
    %v606 = vpop.f32.mrb[0].mxu0
    %v607 = vadd.f32 %v450, %v606
    %v608 = vpop.f32.mrb[0].mxu0
    %v609 = vadd.f32 %v454, %v608
    %610 = vdwg.mxu0
    %611 = vmatprep.subr.mxu0 %v346
    %612 = vmatpush1.msra.mxu0 %v345
    %613 = vmatprep.subr.mxu0 %v352
    %614 = vmatpush1.msra.mxu0 %v351
    %615 = vmatprep.subr.mxu0 %v358
    %616 = vmatpush1.msra.mxu0 %v357
    %617 = vmatprep.subr.mxu0 %v364
    %618 = vmatpush1.msra.mxu0 %v363
    %619 = vmatprep.subr.mxu0 %v370
    %620 = vmatpush1.msra.mxu0 %v369
    %621 = vmatprep.subr.mxu0 %v376
    %622 = vmatpush1.msra.mxu0 %v375
    %623 = vmatprep.subr.mxu0 %v382
    %624 = vmatpush1.msra.mxu0 %v381
    %625 = vmatprep.subr.mxu0 %v388
    %626 = vmatpush1.msra.mxu0 %v387
    %627 = vmatprep.subr.mxu0 %v394
    %628 = vmatpush1.msra.mxu0 %v393
    %629 = vmatprep.subr.mxu0 %v400
    %630 = vmatpush1.msra.mxu0 %v399
    %631 = vmatprep.subr.mxu0 %v406
    %632 = vmatpush1.msra.mxu0 %v405
    %633 = vmatprep.subr.mxu0 %v412
    %634 = vmatpush1.msra.mxu0 %v411
    %635 = vmatprep.subr.mxu0 %v418
    %636 = vmatpush1.msra.mxu0 %v417
    %637 = vmatprep.subr.mxu0 %v424
    %638 = vmatpush1.msra.mxu0 %v423
    %639 = vmatprep.subr.mxu0 %v430
    %640 = vmatpush1.msra.mxu0 %v429
    %641 = vmatprep.subr.mxu0 %v436
    %642 = vmatpush1.msra.mxu0 %v435
    %643 = vmatprep.subr.mxu0 0.0
    %644 = vmatpush1.msra.mxu0 0.0
    %645 = vmatprep.subr.mxu0 0.0
    %646 = vmatpush1.msra.mxu0 0.0
    %647 = vmatprep.subr.mxu0 0.0
    %648 = vmatpush1.msra.mxu0 0.0
    %649 = vmatprep.subr.mxu0 0.0
    %650 = vmatpush1.msra.mxu0 0.0
    %651 = vmatprep.subr.mxu0 0.0
    %652 = vmatpush1.msra.mxu0 0.0
    %653 = vmatprep.subr.mxu0 0.0
    %654 = vmatpush1.msra.mxu0 0.0
    %655 = vmatprep.subr.mxu0 0.0
    %656 = vmatpush1.msra.mxu0 0.0
    %657 = vmatprep.subr.mxu0 0.0
    %658 = vmatpush1.msra.mxu0 0.0
    %659 = vmatprep.subr.mxu0 0.0
    %660 = vmatpush1.msra.mxu0 0.0
    %661 = vmatprep.subr.mxu0 0.0
    %662 = vmatpush1.msra.mxu0 0.0
    %663 = vmatprep.subr.mxu0 0.0
    %664 = vmatpush1.msra.mxu0 0.0
    %665 = vmatprep.subr.mxu0 0.0
    %666 = vmatpush1.msra.mxu0 0.0
    %667 = vmatprep.subr.mxu0 0.0
    %668 = vmatpush1.msra.mxu0 0.0
    %669 = vmatprep.subr.mxu0 0.0
    %670 = vmatpush1.msra.mxu0 0.0
    %671 = vmatprep.subr.mxu0 0.0
    %672 = vmatpush1.msra.mxu0 0.0
    %673 = vmatprep.subr.mxu0 0.0
    %674 = vmatpush1.msra.mxu0 0.0
    %675 = vmatprep.mubr.f32.mxu0 0.0
    %676 = vmatmul.mubr.f32.gmra.mrb[0].mxu0 %v340
    %v677 = vpop.f32.mrb[0].mxu0
    %v678 = vadd.f32 %v458, %v677
    %v679 = vpop.f32.mrb[0].mxu0
    %v680 = vadd.f32 %v462, %v679
    %681 = vdwg.mxu0
    %v682 = vmul.f32 %v609, %v609
    %v683 = vmul.f32 %v678, %v678
    %v684 = vadd.f32 %v682, %v683
    %v685 = vmul.f32 %v680, %v680
    %v686 = vadd.f32 %v684, %v685
    %vm687 = vcmp.lt.f32.partialorder %v686, 1e-06
    %v688 = vsel %vm687, 1.0, %v686
    %v689 = vrsqrt.pop %v688
    %v690 = vmul.f32 %v688, %v689
    %vm691 = vcmp.eq.f32.partialorder %v688, inf
    %v692 = vsel %vm691, %v688, %v690
    %vm693 = vcmp.eq.f32.partialorder %v688, 0.0
    %v694 = vand.u32 %v688, 2147483648
    %v695 = vsel %vm693, %v694, %v692
    %v696 = vrcp.pop 6.0
    %v697 = vmul.f32 %v686, %v696
    %v698 = vsub.f32 1.0, %v697
    %v699 = vand.u32 2147483647, %v695
    %vm700 = vcmp.le.f32.partialorder %v699, 0.7853982
    %vm701 = vcmp.lt.s32.totalorder %v695, 0
    %v702 = vand.u32 %v695, 2139095040
    %v703 = vshrl.u32 %v702, 23
    %v704 = vsub.s32 %v703, 127
    %v705 = vand.u32 2147483647, %v695
    %v706 = vand.u32 %v705, 8388607
    %v707 = vor.u32 %v706, 8388608
    %v708 = vsub.s32 0, %v707
    %v709 = vadd.s32 %v704, 1
    %vm710 = vcmp.gt.s32.totalorder %v709, 0
    %v711 = vsel %vm710, %v709, 0
    %v712 = vshrl.u32 %v711, 5
    %v713 = vand.u32 %v711, 31
    %v714 = vsub.s32 32, %v713
    %v715 = vshrl.u32 683565275, %v714
    %v716 = vshll.u32 683565275, %v713
    %v717 = vshrl.u32 2475754826, %v714
    %v718 = vor.u32 %v716, %v717
    %v719 = vshll.u32 2475754826, %v713
    %v720 = vshrl.u32 2131351028, %v714
    %v721 = vor.u32 %v719, %v720
    %v722 = vshll.u32 2131351028, %v713
    %v723 = vshrl.u32 2102212464, %v714
    %v724 = vor.u32 %v722, %v723
    %v725 = vshll.u32 2102212464, %v713
    %v726 = vshrl.u32 920167782, %v714
    %v727 = vor.u32 %v725, %v726
    %v728 = vshll.u32 920167782, %v713
    %v729 = vshrl.u32 1326507024, %v714
    %v730 = vor.u32 %v728, %v729
    %vm731 = vcmp.lt.s32.totalorder %v712, 1
    %vm732 = vcmp.lt.s32.totalorder %v712, 2
    %vm733 = vcmp.lt.s32.totalorder %v712, 3
    %vm734 = vcmp.lt.s32.totalorder %v712, 4
    %v735 = vsel %vm731, %v715, %v718
    %v736 = vsel %vm734, %v724, 2102212464
    %v737 = vsel %vm733, %v721, %v736
    %v738 = vsel %vm732, %v735, %v737
    %v739 = vsel %vm731, %v718, %v721
    %v740 = vsel %vm734, %v727, 920167782
    %v741 = vsel %vm733, %v724, %v740
    %v742 = vsel %vm732, %v739, %v741
    %v743 = vsel %vm731, %v721, %v724
    %v744 = vsel %vm734, %v730, 1326507024
    %v745 = vsel %vm733, %v727, %v744
    %v746 = vsel %vm732, %v743, %v745
    %v747 = vshll.u32 %v707, 8
    %v748 = vmul.u32.u64.compose %v747, %v746
    %v749 = vextract.low.u32 %v748
    %v750 = vextract.high.u32 %v748
    %v751 = vmul.u32.u64.compose %v747, %v742
    %v752 = vextract.low.u32 %v751
    %v753 = vextract.high.u32 %v751
    %v754 = vmul.u32 %v747, %v738
    %v755 = vadd.s32 %v750, %v752
    %vm756 = vc.u32 %v750, %v752
    %v757 = vadd.s32 %v753, 1
    %v758 = vsel %vm756, %v757, %v753
    %v759 = vadd.s32 %v754, %v758
    %v760 = vadd.s32 %v759, 536870912
    %v761 = vshrl.u32 %v760, 30
    %v762 = vshll.u32 %v761, 30
    %v763 = vsub.s32 %v759, %v762
    %vm764 = vcmp.lt.s32.totalorder %v763, 0
    %v765 = vsub.s32 0, %v763
    %v766 = vsel %vm764, %v765, %v763
    %v767 = vclz %v766
    %v768 = vsub.s32 %v767, 2
    %vm769 = vcmp.gt.s32.totalorder 0, %v768
    %v770 = vsel %vm769, 0, %v768
    %v771 = vsub.s32 32, %v770
    %v772 = vshll.u32 %v763, %v770
    %v773 = vshrl.u32 %v755, %v771
    %v774 = vor.u32 %v772, %v773
    %v775 = vsub.s32 4294967266, %v770
    %v776 = vadd.s32 %v775, 127
    %v777 = vshll.u32 %v776, 23
    %v778 = vor.u32 4788187, %v777
    %v779 = vand.u32 2147483647, %v778
    %v781 = vcvt.s32.f32 %v774
    %v782 = vmul.f32 %v781, %v779
    %v783 = vxor.u32 %v782, 2147483648
    %v784 = vsel %vm701, %v783, %v782
    %v785 = vsub.s32 4, %v761
    %v786 = vsel %vm701, %v785, %v761
    %v787 = vsel %vm700, %v695, %v784
    %v788 = vsel %vm700, 0, %v786
    %v789 = vcosq.f32.pop %v787
    %v790 = vsinq.f32.pop %v787
    %vm791 = vweird.f32 %v695
    %v792 = vadd.s32 %v788, 3
    %v793 = vand.u32 %v792, 3
    %vm794 = vcmp.lt.s32.totalorder %v793, 2
    %vm795 = vcmp.eq.s32.totalorder %v793, 0
    %v796 = vxor.u32 %v790, 2147483648
    %v797 = vsel %vm795, %v789, %v796
    %vm798 = vcmp.eq.s32.totalorder %v793, 2
    %v799 = vxor.u32 %v789, 2147483648
    %v800 = vsel %vm798, %v799, %v790
    %v801 = vsel %vm794, %v797, %v800
    %v802 = vsel %vm791, nan, %v801
    %v803 = vrcp.pop %v695
    %v804 = vmul.f32 %v802, %v803
    %v805 = vsel %vm687, %v698, %v804
    %v806 = vrcp.pop 24.0
    %v807 = vmul.f32 %v686, %v806
    %v808 = vsub.f32 0.5, %v807
    %v809 = vand.u32 2147483647, %v695
    %vm810 = vcmp.le.f32.partialorder %v809, 0.7853982
    %vm811 = vcmp.lt.s32.totalorder %v695, 0
    %v812 = vand.u32 %v695, 2139095040
    %v813 = vshrl.u32 %v812, 23
    %v814 = vsub.s32 %v813, 127
    %v815 = vand.u32 2147483647, %v695
    %v816 = vand.u32 %v815, 8388607
    %v817 = vor.u32 %v816, 8388608
    %v818 = vsub.s32 0, %v817
    %v819 = vadd.s32 %v814, 1
    %vm820 = vcmp.gt.s32.totalorder %v819, 0
    %v821 = vsel %vm820, %v819, 0
    %v822 = vshrl.u32 %v821, 5
    %v823 = vand.u32 %v821, 31
    %v824 = vsub.s32 32, %v823
    %v825 = vshrl.u32 683565275, %v824
    %v826 = vshll.u32 683565275, %v823
    %v827 = vshrl.u32 2475754826, %v824
    %v828 = vor.u32 %v826, %v827
    %v829 = vshll.u32 2475754826, %v823
    %v830 = vshrl.u32 2131351028, %v824
    %v831 = vor.u32 %v829, %v830
    %v832 = vshll.u32 2131351028, %v823
    %v833 = vshrl.u32 2102212464, %v824
    %v834 = vor.u32 %v832, %v833
    %v835 = vshll.u32 2102212464, %v823
    %v836 = vshrl.u32 920167782, %v824
    %v837 = vor.u32 %v835, %v836
    %v838 = vshll.u32 920167782, %v823
    %v839 = vshrl.u32 1326507024, %v824
    %v840 = vor.u32 %v838, %v839
    %vm841 = vcmp.lt.s32.totalorder %v822, 1
    %vm842 = vcmp.lt.s32.totalorder %v822, 2
    %vm843 = vcmp.lt.s32.totalorder %v822, 3
    %vm844 = vcmp.lt.s32.totalorder %v822, 4
    %v845 = vsel %vm841, %v825, %v828
    %v846 = vsel %vm844, %v834, 2102212464
    %v847 = vsel %vm843, %v831, %v846
    %v848 = vsel %vm842, %v845, %v847
    %v849 = vsel %vm841, %v828, %v831
    %v850 = vsel %vm844, %v837, 920167782
    %v851 = vsel %vm843, %v834, %v850
    %v852 = vsel %vm842, %v849, %v851
    %v853 = vsel %vm841, %v831, %v834
    %v854 = vsel %vm844, %v840, 1326507024
    %v855 = vsel %vm843, %v837, %v854
    %v856 = vsel %vm842, %v853, %v855
    %v857 = vshll.u32 %v817, 8
    %v858 = vmul.u32.u64.compose %v857, %v856
    %v859 = vextract.low.u32 %v858
    %v860 = vextract.high.u32 %v858
    %v861 = vmul.u32.u64.compose %v857, %v852
    %v862 = vextract.low.u32 %v861
    %v863 = vextract.high.u32 %v861
    %v864 = vmul.u32 %v857, %v848
    %v865 = vadd.s32 %v860, %v862
    %vm866 = vc.u32 %v860, %v862
    %v867 = vadd.s32 %v863, 1
    %v868 = vsel %vm866, %v867, %v863
    %v869 = vadd.s32 %v864, %v868
    %v870 = vadd.s32 %v869, 536870912
    %v871 = vshrl.u32 %v870, 30
    %v872 = vshll.u32 %v871, 30
    %v873 = vsub.s32 %v869, %v872
    %vm874 = vcmp.lt.s32.totalorder %v873, 0
    %v875 = vsub.s32 0, %v873
    %v876 = vsel %vm874, %v875, %v873
    %v877 = vclz %v876
    %v878 = vsub.s32 %v877, 2
    %vm879 = vcmp.gt.s32.totalorder 0, %v878
    %v880 = vsel %vm879, 0, %v878
    %v881 = vsub.s32 32, %v880
    %v882 = vshll.u32 %v873, %v880
    %v883 = vshrl.u32 %v865, %v881
    %v884 = vor.u32 %v882, %v883
    %v885 = vsub.s32 4294967266, %v880
    %v886 = vadd.s32 %v885, 127
    %v887 = vshll.u32 %v886, 23
    %v888 = vor.u32 4788187, %v887
    %v889 = vand.u32 2147483647, %v888
    %v891 = vcvt.s32.f32 %v884
    %v892 = vmul.f32 %v891, %v889
    %v893 = vxor.u32 %v892, 2147483648
    %v894 = vsel %vm811, %v893, %v892
    %v895 = vsub.s32 4, %v871
    %v896 = vsel %vm811, %v895, %v871
    %v897 = vsel %vm810, %v695, %v894
    %v898 = vsel %vm810, 0, %v896
    %v899 = vcosq.f32.pop %v897
    %v900 = vsinq.f32.pop %v897
    %vm901 = vweird.f32 %v695
    %v902 = vand.u32 %v898, 3
    %vm903 = vcmp.lt.s32.totalorder %v902, 2
    %vm904 = vcmp.eq.s32.totalorder %v902, 0
    %v905 = vxor.u32 %v900, 2147483648
    %v906 = vsel %vm904, %v899, %v905
    %vm907 = vcmp.eq.s32.totalorder %v902, 2
    %v908 = vxor.u32 %v899, 2147483648
    %v909 = vsel %vm907, %v908, %v900
    %v910 = vsel %vm903, %v906, %v909
    %v911 = vsel %vm901, nan, %v910
    %v912 = vsub.f32 1.0, %v911
    %v913 = vrcp.pop %v688
    %v914 = vmul.f32 %v912, %v913
    %v915 = vsel %vm687, %v808, %v914
    %v916 = vmul.f32 %v805, %v609
    %v917 = vmul.f32 %v805, %v678
    %v918 = vmul.f32 %v805, %v680
    %v919 = vmul.f32 %v915, %v609
    %v920 = vmul.f32 %v919, %v678
    %v921 = vmul.f32 %v919, %v680
    %v922 = vmul.f32 %v915, %v678
    %v923 = vmul.f32 %v922, %v680
    %v924 = vadd.f32 %v683, %v685
    %v925 = vmul.f32 %v915, %v924
    %v926 = vsub.f32 1.0, %v925
    %927 = vst [vmem:[#allocation10] sm:$0xff] %v926
    %v928 = vsub.f32 %v920, %v918
    %929 = vst [vmem:[#allocation10 + $0x8] sm:$0xff] %v928
    %v930 = vadd.f32 %v921, %v917
    %931 = vst [vmem:[#allocation10 + $0x10] sm:$0xff] %v930
    %932 = vst [vmem:[#allocation10 + $0x18] sm:$0xff] %v536
    %v933 = vadd.f32 %v920, %v918
    %934 = vst [vmem:[#allocation10 + $0x20] sm:$0xff] %v933
    %v935 = vadd.f32 %v682, %v685
    %v936 = vmul.f32 %v915, %v935
    %v937 = vsub.f32 1.0, %v936
    %938 = vst [vmem:[#allocation10 + $0x28] sm:$0xff] %v937
    %v939 = vsub.f32 %v923, %v916
    %940 = vst [vmem:[#allocation10 + $0x30] sm:$0xff] %v939
    %941 = vst [vmem:[#allocation10 + $0x38] sm:$0xff] %v538
    %v942 = vsub.f32 %v921, %v917
    %943 = vst [vmem:[#allocation10 + $0x40] sm:$0xff] %v942
    %v944 = vadd.f32 %v923, %v916
    %945 = vst [vmem:[#allocation10 + $0x48] sm:$0xff] %v944
    %v946 = vmul.f32 %v915, %v684
    %v947 = vsub.f32 1.0, %v946
    %948 = vst [vmem:[#allocation10 + $0x50] sm:$0xff] %v947
    %949 = vst [vmem:[#allocation10 + $0x58] sm:$0xff] %v607
    // Predicated region
    $region46: #{tpu_custom_call.1} parent=1 // pred_check
      _
    $region47: #{tpu_custom_call.1} parent=1 // pred_check_branch
      %951 = sbr.rel (0) target = $region49
    $region48: #{tpu_custom_call.1} parent=1 // pred_region
      %s953 = ssub.s32 1536, 1536
      %954 = vsyncadd [#allocation4], %s953
      %s956 = sshll.u32 [#allocation10], 4
      %s957 = int_to_ptr.vmem [resolvable:$true] %s956
      %959 = dma.vmem_to_hbm [thread:$0]  %s957, 1536, %s7, [#allocation4]
    $region49: #{tpu_custom_call.1} parent=1 // pred_fallthru
      _
    // Predicated region
    $region50: #{tpu_custom_call.1} parent=1 // pred_check
      _
    $region51: #{tpu_custom_call.1} parent=1 // pred_check_branch
      %961 = sbr.rel (0) target = $region53
    $region52: #{tpu_custom_call.1} parent=1 // pred_region
      %962 = dma.done [#allocation4], 1536
    $region53: #{tpu_custom_call.1} parent=1 // pred_fallthru
      _
    %963 = vsyncpa [#allocation3], 1
    %964 = vsyncpa [#allocation6], 1
    %965 = vsyncpa [#allocation9], 1
    %966 = vsyncpa [#allocation4], 1

</llo_original>
